<compile_context>
chip_gen: v7x
topology: tpu7x:2x2x1
jax: 0.10.0
libtpu: 0.0.40
codegen_flags: <defaults>
</compile_context>

<pallas_src>
import jax
import jax.numpy as jnp
from jax.experimental import pallas as pl
from jax.experimental.pallas import tpu as pltpu


_LANE = 128
_SUBLANE = 8


def _round_up(n, m):
    return ((n + m - 1) // m) * m


def _vmem_capacity_bytes():
    try:
        return int(pltpu.get_tpu_info().vmem_capacity_bytes)
    except Exception:
        return 64 * 2**20  # conservative fallback = v7x per-TensorCore VMEM


def _batch_tile(B):
    """Sublane-aligned batch tile; >=2 tiles when possible so the 'parallel'
    grid axis spans both v7x TensorCores; 256 rows when batch is large."""
    B8 = _round_up(max(B, 1), _SUBLANE)
    if B8 >= 512:
        return 256          # matches v6e/v7x 256-row MXU, still >=2 tiles
    if B8 >= 256:
        return 128
    if B8 <= _SUBLANE:
        return _SUBLANE
    return _round_up((B8 + 1) // 2, _SUBLANE)


def _vmem_limit_bytes(TB, Ip, Hp, weights):
    wbytes = sum(int(a.size) * a.dtype.itemsize for a in weights)
    act = 2 * 4 * (TB * Ip + 2 * TB * Hp)            # double-buffered x/h/out f32 tiles
    inter = 4 * TB * (3 * Hp + 2 * Hp + 2 * Hp)      # xa, hru, ch/c/u f32 intermediates
    need = 2 * wbytes + act + inter                  # weights are double-buffered by default
    cap = _vmem_capacity_bytes()
    return int(min(max(2 * need, 16 * 2**20), (3 * cap) // 4))


# ----------------------------- kernel bodies -------------------------------

def _gru_math(hidden_pad, matmul_dtype):
    Hp = hidden_pad
    md = matmul_dtype

    def step(x, h, wx_all, wh_ru, wh_c):
        # x carries a ones column at index I so the three gate biases (incl.
        # forget_bias) ride inside this matmul for free.
        xa = jnp.dot(x.astype(md), wx_all, preferred_element_type=jnp.float32)
        hru = jnp.dot(h.astype(md), wh_ru, preferred_element_type=jnp.float32)
        # sigmoid(z) == 0.5*tanh(0.5*z) + 0.5 : one EUP op per gate.
        r = 0.5 * jnp.tanh(0.5 * (xa[:, :Hp] + hru[:, :Hp])) + 0.5
        u = 0.5 * jnp.tanh(0.5 * (xa[:, Hp:2 * Hp] + hru[:, Hp:])) + 0.5
        ch = jnp.dot((r * h).astype(md), wh_c, preferred_element_type=jnp.float32)
        c = jnp.tanh(xa[:, 2 * Hp:] + ch)
        # u*h + (1-u)*c == c + u*(h - c)
        return c + u * (h - c)

    return step


def _step_kernel(hidden_pad, matmul_dtype):
    step = _gru_math(hidden_pad, matmul_dtype)

    def kernel(x_ref, h_ref, wx_ref, whru_ref, whc_ref, o_ref):
        o_ref[...] = step(x_ref[...], h_ref[...],
                          wx_ref[...], whru_ref[...], whc_ref[...])

    return kernel


def _seq_kernel(hidden_pad, matmul_dtype):
    step = _gru_math(hidden_pad, matmul_dtype)

    def kernel(x_ref, h0_ref, wx_ref, whru_ref, whc_ref, hseq_ref, h_scr):
        @pl.when(pl.program_id(1) == 0)
        def _():
            h_scr[...] = h0_ref[...]

        h_new = step(x_ref[0], h_scr[...],
                     wx_ref[...], whru_ref[...], whc_ref[...])
        h_scr[...] = h_new
        hseq_ref[0] = h_new

    return kernel


# --------------------------- host-side wrappers -----------------------------

def prepare_params(params, input_size, hidden_size, forget_bias=1.0,
                   matmul_dtype=jnp.bfloat16):
    """One-time weight prep: transpose, split x/h blocks, pad to (8,128)-friendly
    shapes, fuse gate blocks, fold forget_bias + all biases into the x-weights."""
    I, H = input_size, hidden_size
    Ip = _round_up(I + 1, _SUBLANE)     # +1: ones column that carries the biases
    Hp = _round_up(H, _LANE)

    W_ru = jnp.asarray(params["W_ru"], jnp.float32)   # (2H, I+H)
    b_ru = jnp.asarray(params["b_ru"], jnp.float32)   # (2H,)
    W_c = jnp.asarray(params["W_c"], jnp.float32)     # (H, I+H)
    b_c = jnp.asarray(params["b_c"], jnp.float32)     # (H,)

    W_ru_T, W_c_T = W_ru.T, W_c.T                     # y = x @ W.T + b
    wx_r, wx_u = W_ru_T[:I, :H], W_ru_T[:I, H:]
    wh_r, wh_u = W_ru_T[I:, :H], W_ru_T[I:, H:]
    wx_c, wh_c = W_c_T[:I], W_c_T[I:]

    def x_block(w, b):
        blk = jnp.zeros((Ip, Hp), jnp.float32)
        blk = blk.at[:I, :H].set(w)
        blk = blk.at[I, :H].set(b)      # bias rides in the ones-column row
        return blk

    def h_block(w):
        return jnp.pad(w, ((0, Hp - H), (0, Hp - H)))

    wx_all = jnp.concatenate(
        [x_block(wx_r, b_ru[:H]),
         x_block(wx_u, b_ru[H:] + jnp.float32(forget_bias)),  # forget_bias folded
         x_block(wx_c, b_c)], axis=1)                          # (Ip, 3*Hp)
    wh_ru = jnp.concatenate([h_block(wh_r), h_block(wh_u)], axis=1)  # (Hp, 2*Hp)
    wh_c_p = h_block(wh_c)                                           # (Hp, Hp)

    return {
        "wx_all": wx_all.astype(matmul_dtype),
        "wh_ru": wh_ru.astype(matmul_dtype),
        "wh_c": wh_c_p.astype(matmul_dtype),
        "input_size": I, "hidden_size": H,
        "input_pad": Ip, "hidden_pad": Hp,
        "matmul_dtype": matmul_dtype,
    }


def _pad_x(x, Bp, Ip, I):
    B = x.shape[0]
    xp = jnp.zeros((Bp, Ip), jnp.float32)
    xp = xp.at[:B, :I].set(x.astype(jnp.float32))
    return xp.at[:B, I].set(1.0)


def _pad_h(h, Bp, Hp, H):
    B = h.shape[0]
    return jnp.zeros((Bp, Hp), jnp.float32).at[:B, :H].set(h.astype(jnp.float32))


def lfads_gru_cell_prepared(x, h, prep):
    """One GRU step with pre-prepared params. x: (B, I), h: (B, H) -> (B, H)."""
    B, I = x.shape
    H, Ip, Hp = prep["hidden_size"], prep["input_pad"], prep["hidden_pad"]
    TB = _batch_tile(B)
    Bp = _round_up(B, TB)

    x_p = _pad_x(x, Bp, Ip, I)
    h_p = _pad_h(h, Bp, Hp, H)
    w = (prep["wx_all"], prep["wh_ru"], prep["wh_c"])

    def full(a):  # weights resident in VMEM across all batch tiles
        return pl.BlockSpec(a.shape, lambda i: (0, 0))

    out = pl.pallas_call(
        _step_kernel(Hp, prep["matmul_dtype"]),
        out_shape=jax.ShapeDtypeStruct((Bp, Hp), jnp.float32),
        grid=(Bp // TB,),
        in_specs=[pl.BlockSpec((TB, Ip), lambda i: (i, 0)),
                  pl.BlockSpec((TB, Hp), lambda i: (i, 0)),
                  full(w[0]), full(w[1]), full(w[2])],
        out_specs=pl.BlockSpec((TB, Hp), lambda i: (i, 0)),
        compiler_params=pltpu.CompilerParams(
            dimension_semantics=("parallel",),
            vmem_limit_bytes=_vmem_limit_bytes(TB, Ip, Hp, w)),
    )(x_p, h_p, *w)
    return out[:B, :H]


def lfads_gru_sequence(x_seq, h0, prep):
    """Fused T-step GRU: one pallas_call, weights DMA'd from HBM once, hidden
    state carried in VMEM scratch.  x_seq: (T, B, I), h0: (B, H) -> (T, B, H)."""
    T, B, I = x_seq.shape
    H, Ip, Hp = prep["hidden_size"], prep["input_pad"], prep["hidden_pad"]
    TB = _batch_tile(B)
    Bp = _round_up(B, TB)

    x_p = jnp.zeros((T, Bp, Ip), jnp.float32)
    x_p = x_p.at[:, :B, :I].set(x_seq.astype(jnp.float32))
    x_p = x_p.at[:, :B, I].set(1.0)
    h0_p = _pad_h(h0, Bp, Hp, H)
    w = (prep["wx_all"], prep["wh_ru"], prep["wh_c"])

    def full(a):
        return pl.BlockSpec(a.shape, lambda b, t: (0, 0))

    out = pl.pallas_call(
        _seq_kernel(Hp, prep["matmul_dtype"]),
        out_shape=jax.ShapeDtypeStruct((T, Bp, Hp), jnp.float32),
        grid=(Bp // TB, T),
        in_specs=[pl.BlockSpec((1, TB, Ip), lambda b, t: (t, b, 0)),
                  pl.BlockSpec((TB, Hp), lambda b, t: (b, 0)),
                  full(w[0]), full(w[1]), full(w[2])],
        out_specs=pl.BlockSpec((1, TB, Hp), lambda b, t: (t, b, 0)),
        scratch_shapes=[pltpu.VMEM((TB, Hp), jnp.float32)],
        compiler_params=pltpu.CompilerParams(
            dimension_semantics=("parallel", "arbitrary"),
            vmem_limit_bytes=_vmem_limit_bytes(TB, Ip, Hp, w)),
    )(x_p, h0_p, *w)
    return out[:, :B, :H]


def lfads_gru_cell(x, h, params, forget_bias=1.0, matmul_dtype=jnp.bfloat16):
    """Convenience wrapper matching the PyTorch module's forward(x, h)."""
    prep = prepare_params(params, x.shape[1], h.shape[1], forget_bias, matmul_dtype)
    return lfads_gru_cell_prepared(x, h, prep)


# ------------------------------- reference ----------------------------------

def _reference(x, h, params, forget_bias=1.0):
    """Pure-JAX reference mirroring the PyTorch forward."""
    W_ru, b_ru, W_c, b_c = params["W_ru"], params["b_ru"], params["W_c"], params["b_c"]
    H = h.shape[1]
    xh = jnp.concatenate([x, h], axis=1)
    ru = xh @ W_ru.T + b_ru
    r = jax.nn.sigmoid(ru[:, :H])
    u = jax.nn.sigmoid(ru[:, H:] + forget_bias)
    xrh = jnp.concatenate([x, r * h], axis=1)
    c = jnp.tanh(xrh @ W_c.T + b_c)
    return u * h + (1.0 - u) * c


def init_params(key, input_size, hidden_size):
    """Deterministic synthetic parameters with nn.Linear-like shapes."""
    xh = input_size + hidden_size
    k1, k2, k3, k4 = jax.random.split(key, 4)
    bound = 1.0 / jnp.sqrt(xh)
    return {
        "W_ru": jax.random.uniform(k1, (2 * hidden_size, xh), jnp.float32, -bound, bound),
        "b_ru": jax.random.uniform(k2, (2 * hidden_size,), jnp.float32, -bound, bound),
        "W_c": jax.random.uniform(k3, (hidden_size, xh), jnp.float32, -bound, bound),
        "b_c": jax.random.uniform(k4, (hidden_size,), jnp.float32, -bound, bound),
    }


if __name__ == "__main__":
    B, INPUT, HIDDEN, T = 2, 4, 32, 8
    FORGET_BIAS = 1.0

    key = jax.random.PRNGKey(0)
    kp, kx, kh, ks = jax.random.split(key, 4)
    params = init_params(kp, INPUT, HIDDEN)
    x = jax.random.normal(kx, (B, INPUT), jnp.float32)
    h = jax.random.normal(kh, (B, HIDDEN), jnp.float32)
    x_seq = jax.random.normal(ks, (T, B, INPUT), jnp.float32)

    # Strict f32 path: single step vs. PyTorch-equivalent reference.
    prep_f32 = prepare_params(params, INPUT, HIDDEN, FORGET_BIAS,
                              matmul_dtype=jnp.float32)
    h_new = jax.block_until_ready(lfads_gru_cell_prepared(x, h, prep_f32))
    h_ref = _reference(x, h, params, FORGET_BIAS)
    assert h_new.shape == (B, HIDDEN)
    assert jnp.allclose(h_new, h_ref, atol=1e-5, rtol=1e-5)

    # Fused multi-step kernel: weights read from HBM once for all T steps.
    hs = jax.block_until_ready(lfads_gru_sequence(x_seq, h, prep_f32))
    h_cur, hs_ref = h, []
    for t in range(T):
        h_cur = _reference(x_seq[t], h_cur, params, FORGET_BIAS)
        hs_ref.append(h_cur)
    hs_ref = jnp.stack(hs_ref)
    assert hs.shape == (T, B, HIDDEN)
    assert jnp.allclose(hs, hs_ref, atol=1e-4, rtol=1e-4)

    # Default bf16-weight perf path (f32 accumulation / elementwise): sanity check.
    prep_bf16 = prepare_params(params, INPUT, HIDDEN, FORGET_BIAS)
    h_bf = jax.block_until_ready(lfads_gru_cell_prepared(x, h, prep_bf16))
    assert float(jnp.max(jnp.abs(h_bf - h_ref))) < 5e-2

    print("KERNEL_OK")
</pallas_src>

<mosaic_0001>
module attributes {stable_mosaic.version = 11 : i64} {
  func.func @kernel(%arg0: i32, %arg1: memref<8x8xf32, #tpu.memory_space<vmem>>, %arg2: memref<8x128xf32, #tpu.memory_space<vmem>>, %arg3: memref<8x384xf32, #tpu.memory_space<vmem>>, %arg4: memref<128x256xf32, #tpu.memory_space<vmem>>, %arg5: memref<128x128xf32, #tpu.memory_space<vmem>>, %arg6: memref<8x128xf32, #tpu.memory_space<vmem>>) attributes {dimension_semantics = [#tpu.dimension_semantics<parallel>], iteration_bounds = array<i64: 1>, scalar_prefetch = 0 : i64, scratch_operands = 0 : i64, tpu.core_type = #tpu.core_type<tc>, window_params = [{transform_indices = @transform_0, window_bounds = array<i64: 8, 8>}, {transform_indices = @transform_1, window_bounds = array<i64: 8, 128>}, {pipeline_mode = #tpu.pipeline_mode<synchronous>, transform_indices = @transform_2, window_bounds = array<i64: 8, 384>}, {pipeline_mode = #tpu.pipeline_mode<synchronous>, transform_indices = @transform_3, window_bounds = array<i64: 128, 256>}, {pipeline_mode = #tpu.pipeline_mode<synchronous>, transform_indices = @transform_4, window_bounds = array<i64: 128, 128>}, {transform_indices = @transform_5, window_bounds = array<i64: 8, 128>}]} {
    %c0 = arith.constant 0 : index
    %c0_0 = arith.constant 0 : index
    %0 = vector.load %arg1[%c0, %c0_0] : memref<8x8xf32, #tpu.memory_space<vmem>>, vector<8x8xf32>
    %c0_1 = arith.constant 0 : index
    %c0_2 = arith.constant 0 : index
    %1 = vector.load %arg2[%c0_1, %c0_2] : memref<8x128xf32, #tpu.memory_space<vmem>>, vector<8x128xf32>
    %c0_3 = arith.constant 0 : index
    %c0_4 = arith.constant 0 : index
    %2 = vector.load %arg3[%c0_3, %c0_4] : memref<8x384xf32, #tpu.memory_space<vmem>>, vector<8x384xf32>
    %c0_5 = arith.constant 0 : index
    %c0_6 = arith.constant 0 : index
    %3 = vector.load %arg4[%c0_5, %c0_6] : memref<128x256xf32, #tpu.memory_space<vmem>>, vector<128x256xf32>
    %c0_7 = arith.constant 0 : index
    %c0_8 = arith.constant 0 : index
    %4 = vector.load %arg5[%c0_7, %c0_8] : memref<128x128xf32, #tpu.memory_space<vmem>>, vector<128x128xf32>
    %cst = arith.constant dense<0.000000e+00> : vector<8x384xf32>
    %5 = tpu.matmul %0, %2, %cst {dimension_numbers = #tpu.dot_dimension_numbers<[1], [0], [0], [1], [0, 0, 1, 1], [], []>} : vector<8x8xf32>, vector<8x384xf32>, vector<8x384xf32> -> vector<8x384xf32>
    %cst_9 = arith.constant dense<0.000000e+00> : vector<8x256xf32>
    %6 = tpu.matmul %1, %3, %cst_9 {dimension_numbers = #tpu.dot_dimension_numbers<[1], [0], [0], [1], [0, 0, 1, 1], [], []>} : vector<8x128xf32>, vector<128x256xf32>, vector<8x256xf32> -> vector<8x256xf32>
    %7 = vector.extract_strided_slice %5 {offsets = [0, 0], sizes = [8, 128], strides = [1, 1]} : vector<8x384xf32> to vector<8x128xf32>
    %8 = vector.extract_strided_slice %6 {offsets = [0, 0], sizes = [8, 128], strides = [1, 1]} : vector<8x256xf32> to vector<8x128xf32>
    %9 = arith.addf %7, %8 : vector<8x128xf32>
    %cst_10 = arith.constant 5.000000e-01 : f32
    %10 = vector.broadcast %cst_10 : f32 to vector<8x128xf32>
    %11 = arith.mulf %10, %9 : vector<8x128xf32>
    %12 = math.tanh %11 : vector<8x128xf32>
    %cst_11 = arith.constant 5.000000e-01 : f32
    %13 = vector.broadcast %cst_11 : f32 to vector<8x128xf32>
    %14 = arith.mulf %13, %12 : vector<8x128xf32>
    %cst_12 = arith.constant 5.000000e-01 : f32
    %15 = vector.broadcast %cst_12 : f32 to vector<8x128xf32>
    %16 = arith.addf %14, %15 : vector<8x128xf32>
    %17 = vector.extract_strided_slice %5 {offsets = [0, 128], sizes = [8, 128], strides = [1, 1]} : vector<8x384xf32> to vector<8x128xf32>
    %18 = vector.extract_strided_slice %6 {offsets = [0, 128], sizes = [8, 128], strides = [1, 1]} : vector<8x256xf32> to vector<8x128xf32>
    %19 = arith.addf %17, %18 : vector<8x128xf32>
    %cst_13 = arith.constant 5.000000e-01 : f32
    %20 = vector.broadcast %cst_13 : f32 to vector<8x128xf32>
    %21 = arith.mulf %20, %19 : vector<8x128xf32>
    %22 = math.tanh %21 : vector<8x128xf32>
    %cst_14 = arith.constant 5.000000e-01 : f32
    %23 = vector.broadcast %cst_14 : f32 to vector<8x128xf32>
    %24 = arith.mulf %23, %22 : vector<8x128xf32>
    %cst_15 = arith.constant 5.000000e-01 : f32
    %25 = vector.broadcast %cst_15 : f32 to vector<8x128xf32>
    %26 = arith.addf %24, %25 : vector<8x128xf32>
    %27 = arith.mulf %16, %1 : vector<8x128xf32>
    %cst_16 = arith.constant dense<0.000000e+00> : vector<8x128xf32>
    %28 = tpu.matmul %27, %4, %cst_16 {dimension_numbers = #tpu.dot_dimension_numbers<[1], [0], [0], [1], [0, 0, 1, 1], [], []>} : vector<8x128xf32>, vector<128x128xf32>, vector<8x128xf32> -> vector<8x128xf32>
    %29 = vector.extract_strided_slice %5 {offsets = [0, 256], sizes = [8, 128], strides = [1, 1]} : vector<8x384xf32> to vector<8x128xf32>
    %30 = arith.addf %29, %28 : vector<8x128xf32>
    %31 = math.tanh %30 : vector<8x128xf32>
    %32 = arith.subf %1, %31 : vector<8x128xf32>
    %33 = arith.mulf %26, %32 : vector<8x128xf32>
    %34 = arith.addf %31, %33 : vector<8x128xf32>
    %c0_17 = arith.constant 0 : index
    %c0_18 = arith.constant 0 : index
    %35 = vector.load %arg6[%c0_17, %c0_18] : memref<8x128xf32, #tpu.memory_space<vmem>>, vector<8x128xf32>
    tpu.vector_store %arg6[%c0_17, %c0_18], %34 {strides = array<i32>} : memref<8x128xf32, #tpu.memory_space<vmem>>, vector<8x128xf32>,
    return
  }
  func.func @transform_0(%arg0: i32) -> (i32, i32) {
    %c0_i32 = arith.constant 0 : i32
    %c0_i32_0 = arith.constant 0 : i32
    return %arg0, %c0_i32 : i32, i32
  }
  func.func @transform_1(%arg0: i32) -> (i32, i32) {
    %c0_i32 = arith.constant 0 : i32
    %c0_i32_0 = arith.constant 0 : i32
    return %arg0, %c0_i32 : i32, i32
  }
  func.func @transform_2(%arg0: i32) -> (i32, i32) {
    %c0_i32 = arith.constant 0 : i32
    %c0_i32_0 = arith.constant 0 : i32
    %c0_i32_1 = arith.constant 0 : i32
    return %c0_i32, %c0_i32_0 : i32, i32
  }
  func.func @transform_3(%arg0: i32) -> (i32, i32) {
    %c0_i32 = arith.constant 0 : i32
    %c0_i32_0 = arith.constant 0 : i32
    %c0_i32_1 = arith.constant 0 : i32
    return %c0_i32, %c0_i32_0 : i32, i32
  }
  func.func @transform_4(%arg0: i32) -> (i32, i32) {
    %c0_i32 = arith.constant 0 : i32
    %c0_i32_0 = arith.constant 0 : i32
    %c0_i32_1 = arith.constant 0 : i32
    return %c0_i32, %c0_i32_0 : i32, i32
  }
  func.func @transform_5(%arg0: i32) -> (i32, i32) {
    %c0_i32 = arith.constant 0 : i32
    %c0_i32_0 = arith.constant 0 : i32
    return %arg0, %c0_i32 : i32, i32
  }
}

</mosaic_0001>

<llo_original>
// kernel: tpu_custom_call.1
$region0: #{tpu_custom_call.1}
  #allocation0 [shape = 'u32[]', space=smem, size = 0x4, offset = 0x4, fixed_abs, tag = 'smem constant byte address 0x4 - core index']
  #allocation1 [shape = 'u32[144,128]{1,0:T(1,128)}', space=vmem, size = 0x12000, scoped, tag = 'internal scratch']
  %s0 = inlined_call_operand.hbm [shape: f32[8,8], index: 0, kind: input, shape index: {}]
  %s1 = inlined_call_operand.hbm [shape: f32[8,128], index: 1, kind: input, shape index: {}]
  %s2 = inlined_call_operand.hbm [shape: f32[8,384], index: 2, kind: input, shape index: {}]
  %s3 = inlined_call_operand.hbm [shape: f32[128,256], index: 3, kind: input, shape index: {}]
  %s4 = inlined_call_operand.hbm [shape: f32[128,128], index: 4, kind: input, shape index: {}]
  %s5 = inlined_call_operand.hbm [shape: f32[8,128], index: 5, kind: output, shape index: {}]
  %s6 = sld [smem:[#allocation0]]
  $region50: #{tpu_custom_call.1} parent=0
    _
  %s8 = ssub.s32 1, %s6
  %s9 = scalar_select 0, %s8, %s6
  $region1: #{tpu_custom_call.1} parent=0
    #allocation2 [shape = 'u8[4096]{0}', space=vmem, size = 0x1000, scoped, tag = 'input window, operand 0, single buffered']
    #allocation3 [shape = 's32[1]{0}', space=sflag, size = 0x4, scoped, tag = 'scoped memory for tpu_custom_call.1']
    #allocation4 [shape = 's32[1]{0}', space=sflag, size = 0x4, scoped, tag = 'scoped memory for tpu_custom_call.1']
    #allocation5 [shape = 'u8[4096]{0}', space=vmem, size = 0x1000, scoped, tag = 'input window, operand 1, single buffered']
    #allocation6 [shape = 's32[1]{0}', space=sflag, size = 0x4, scoped, tag = 'scoped memory for tpu_custom_call.1']
    #allocation7 [shape = 'u8[12288]{0}', space=vmem, size = 0x3000, scoped, tag = 'input window, operand 2, single buffered']
    #allocation8 [shape = 'u8[131072]{0}', space=vmem, size = 0x20000, scoped, tag = 'input window, operand 3, single buffered']
    #allocation9 [shape = 's32[1]{0}', space=sflag, size = 0x4, scoped, tag = 'scoped memory for tpu_custom_call.1']
    #allocation10 [shape = 'u8[65536]{0}', space=vmem, size = 0x10000, scoped, tag = 'input window, operand 4, single buffered']
    #allocation11 [shape = 'u8[4096]{0}', space=vmem, size = 0x1000, scoped, tag = 'output window, operand 0, single buffered']
    %10 = vsyncpa [#allocation3], 0
    %11 = vsyncpa [#allocation6], 0
    %12 = vsyncpa [#allocation9], 0
    %13 = vsyncpa [#allocation4], 0
    // Predicated region
    $region2: #{tpu_custom_call.1} parent=1 // pred_check
      _
    $region3: #{tpu_custom_call.1} parent=1 // pred_check_branch
      %15 = sbr.rel (0) target = $region5
    $region4: #{tpu_custom_call.1} parent=1 // pred_region
      %s17 = ssub.s32 128, 128
      %18 = vsyncadd [#allocation3], %s17
      %s20 = sshll.u32 [#allocation2], 4
      %s21 = int_to_ptr.vmem [resolvable:$true] %s20
      %23 = dma.hbm_to_vmem [thread:$0]  %s0, 128, %s21, [#allocation3]
    $region5: #{tpu_custom_call.1} parent=1 // pred_fallthru
      _
    // Predicated region
    $region6: #{tpu_custom_call.1} parent=1 // pred_check
      _
    $region7: #{tpu_custom_call.1} parent=1 // pred_check_branch
      %25 = sbr.rel (0) target = $region9
    $region8: #{tpu_custom_call.1} parent=1 // pred_region
      %s27 = ssub.s32 128, 128
      %28 = vsyncadd [#allocation6], %s27
      %s30 = sshll.u32 [#allocation5], 4
      %s31 = int_to_ptr.vmem [resolvable:$true] %s30
      %33 = dma.hbm_to_vmem [thread:$0]  %s1, 128, %s31, [#allocation6]
    $region9: #{tpu_custom_call.1} parent=1 // pred_fallthru
      _
    // Predicated region
    $region10: #{tpu_custom_call.1} parent=1 // pred_check
      _
    $region11: #{tpu_custom_call.1} parent=1 // pred_check_branch
      %35 = sbr.rel (0) target = $region13
    $region12: #{tpu_custom_call.1} parent=1 // pred_region
      %s37 = ssub.s32 384, 384
      %38 = vsyncadd [#allocation6], %s37
      %s40 = sshll.u32 [#allocation7], 4
      %s41 = int_to_ptr.vmem [resolvable:$true] %s40
      %43 = dma.hbm_to_vmem [thread:$0]  %s2, 384, %s41, [#allocation6]
    $region13: #{tpu_custom_call.1} parent=1 // pred_fallthru
      _
    // Predicated region
    $region14: #{tpu_custom_call.1} parent=1 // pred_check
      _
    $region15: #{tpu_custom_call.1} parent=1 // pred_check_branch
      %45 = sbr.rel (0) target = $region17
    $region16: #{tpu_custom_call.1} parent=1 // pred_region
      %s47 = ssub.s32 4096, 4096
      %48 = vsyncadd [#allocation9], %s47
      %s49 = sshll.u32 [#allocation8], 4
      %s50 = int_to_ptr.vmem [resolvable:$true] %s49
      %55 = dma.hbm_to_vmem [thread:$0]  %s3, 4096, %s50, [#allocation9], 256, 256, 16
    $region17: #{tpu_custom_call.1} parent=1 // pred_fallthru
      _
    // Predicated region
    $region18: #{tpu_custom_call.1} parent=1 // pred_check
      _
    $region19: #{tpu_custom_call.1} parent=1 // pred_check_branch
      %57 = sbr.rel (0) target = $region21
    $region20: #{tpu_custom_call.1} parent=1 // pred_region
      %s59 = ssub.s32 2048, 2048
      %60 = vsyncadd [#allocation9], %s59
      %s61 = sshll.u32 [#allocation10], 4
      %s62 = int_to_ptr.vmem [resolvable:$true] %s61
      %67 = dma.hbm_to_vmem [thread:$0]  %s4, 2048, %s62, [#allocation9], 128, 128, 8
    $region21: #{tpu_custom_call.1} parent=1 // pred_fallthru
      _
    // Predicated region
    $region22: #{tpu_custom_call.1} parent=1 // pred_check
      _
    $region23: #{tpu_custom_call.1} parent=1 // pred_check_branch
      %69 = sbr.rel (0) target = $region25
    $region24: #{tpu_custom_call.1} parent=1 // pred_region
      %70 = dma.done [#allocation3], 128
    $region25: #{tpu_custom_call.1} parent=1 // pred_fallthru
      _
    // Predicated region
    $region26: #{tpu_custom_call.1} parent=1 // pred_check
      _
    $region27: #{tpu_custom_call.1} parent=1 // pred_check_branch
      %72 = sbr.rel (0) target = $region29
    $region28: #{tpu_custom_call.1} parent=1 // pred_region
      %73 = dma.done [#allocation6], 128
    $region29: #{tpu_custom_call.1} parent=1 // pred_fallthru
      _
    // Predicated region
    $region30: #{tpu_custom_call.1} parent=1 // pred_check
      _
    $region31: #{tpu_custom_call.1} parent=1 // pred_check_branch
      %75 = sbr.rel (0) target = $region33
    $region32: #{tpu_custom_call.1} parent=1 // pred_region
      %76 = dma.done [#allocation6], 384
    $region33: #{tpu_custom_call.1} parent=1 // pred_fallthru
      _
    // Predicated region
    $region34: #{tpu_custom_call.1} parent=1 // pred_check
      _
    $region35: #{tpu_custom_call.1} parent=1 // pred_check_branch
      %78 = sbr.rel (0) target = $region37
    $region36: #{tpu_custom_call.1} parent=1 // pred_region
      %79 = dma.done [#allocation9], 4096
    $region37: #{tpu_custom_call.1} parent=1 // pred_fallthru
      _
    // Predicated region
    $region38: #{tpu_custom_call.1} parent=1 // pred_check
      _
    $region39: #{tpu_custom_call.1} parent=1 // pred_check_branch
      %81 = sbr.rel (0) target = $region41
    $region40: #{tpu_custom_call.1} parent=1 // pred_region
      %82 = dma.done [#allocation9], 2048
    $region41: #{tpu_custom_call.1} parent=1 // pred_fallthru
      _
    %v83 = vld [vmem:[#allocation2] sm:$0xff]
    %v84 = vld [vmem:[#allocation5] sm:$0xff]
    %v85 = vld [vmem:[#allocation7] sm:$0xff]
    %v86 = vld [vmem:[#allocation7 + $0x8] sm:$0xff]
    %v87 = vld [vmem:[#allocation7 + $0x10] sm:$0xff]
    %v88 = vld [vmem:[#allocation8] sm:$0xff]
    %v89 = vld [vmem:[#allocation8 + $0x8] sm:$0xff]
    %v90 = vld [vmem:[#allocation8 + $0x10] sm:$0xff]
    %v91 = vld [vmem:[#allocation8 + $0x18] sm:$0xff]
    %v92 = vld [vmem:[#allocation8 + $0x20] sm:$0xff]
    %v93 = vld [vmem:[#allocation8 + $0x28] sm:$0xff]
    %v94 = vld [vmem:[#allocation8 + $0x30] sm:$0xff]
    %v95 = vld [vmem:[#allocation8 + $0x38] sm:$0xff]
    %v96 = vld [vmem:[#allocation8 + $0x40] sm:$0xff]
    %v97 = vld [vmem:[#allocation8 + $0x48] sm:$0xff]
    %v98 = vld [vmem:[#allocation8 + $0x50] sm:$0xff]
    %v99 = vld [vmem:[#allocation8 + $0x58] sm:$0xff]
    %v100 = vld [vmem:[#allocation8 + $0x60] sm:$0xff]
    %v101 = vld [vmem:[#allocation8 + $0x68] sm:$0xff]
    %v102 = vld [vmem:[#allocation8 + $0x70] sm:$0xff]
    %v103 = vld [vmem:[#allocation8 + $0x78] sm:$0xff]
    %v104 = vld [vmem:[#allocation8 + $0x80] sm:$0xff]
    %v105 = vld [vmem:[#allocation8 + $0x88] sm:$0xff]
    %v106 = vld [vmem:[#allocation8 + $0x90] sm:$0xff]
    %v107 = vld [vmem:[#allocation8 + $0x98] sm:$0xff]
    %v108 = vld [vmem:[#allocation8 + $0xa0] sm:$0xff]
    %v109 = vld [vmem:[#allocation8 + $0xa8] sm:$0xff]
    %v110 = vld [vmem:[#allocation8 + $0xb0] sm:$0xff]
    %v111 = vld [vmem:[#allocation8 + $0xb8] sm:$0xff]
    %v112 = vld [vmem:[#allocation8 + $0xc0] sm:$0xff]
    %v113 = vld [vmem:[#allocation8 + $0xc8] sm:$0xff]
    %v114 = vld [vmem:[#allocation8 + $0xd0] sm:$0xff]
    %v115 = vld [vmem:[#allocation8 + $0xd8] sm:$0xff]
    %v116 = vld [vmem:[#allocation8 + $0xe0] sm:$0xff]
    %v117 = vld [vmem:[#allocation8 + $0xe8] sm:$0xff]
    %v118 = vld [vmem:[#allocation8 + $0xf0] sm:$0xff]
    %v119 = vld [vmem:[#allocation8 + $0xf8] sm:$0xff]
    %v120 = vld [vmem:[#allocation10] sm:$0xff]
    %v121 = vld [vmem:[#allocation10 + $0x8] sm:$0xff]
    %v122 = vld [vmem:[#allocation10 + $0x10] sm:$0xff]
    %v123 = vld [vmem:[#allocation10 + $0x18] sm:$0xff]
    %v124 = vld [vmem:[#allocation10 + $0x20] sm:$0xff]
    %v125 = vld [vmem:[#allocation10 + $0x28] sm:$0xff]
    %v126 = vld [vmem:[#allocation10 + $0x30] sm:$0xff]
    %v127 = vld [vmem:[#allocation10 + $0x38] sm:$0xff]
    %v128 = vld [vmem:[#allocation10 + $0x40] sm:$0xff]
    %v129 = vld [vmem:[#allocation10 + $0x48] sm:$0xff]
    %v130 = vld [vmem:[#allocation10 + $0x50] sm:$0xff]
    %v131 = vld [vmem:[#allocation10 + $0x58] sm:$0xff]
    %v132 = vld [vmem:[#allocation10 + $0x60] sm:$0xff]
    %v133 = vld [vmem:[#allocation10 + $0x68] sm:$0xff]
    %v134 = vld [vmem:[#allocation10 + $0x70] sm:$0xff]
    %v135 = vld [vmem:[#allocation10 + $0x78] sm:$0xff]
    %vm136 = vcmask 64512
    %v138 = vsel %vm136, %v83, 0
    %140 = vmatprep.subr.mxu0 %v86
    %141 = vmatpush1.msra.mxu0 %v85
    %142 = vmatprep.subr.mxu0 0.0
    %143 = vmatpush1.msra.mxu0 0.0
    %144 = vmatprep.subr.mxu0 0.0
    %145 = vmatpush1.msra.mxu0 0.0
    %146 = vmatprep.subr.mxu0 0.0
    %147 = vmatpush1.msra.mxu0 0.0
    %148 = vmatprep.subr.mxu0 0.0
    %149 = vmatpush1.msra.mxu0 0.0
    %150 = vmatprep.subr.mxu0 0.0
    %151 = vmatpush1.msra.mxu0 0.0
    %152 = vmatprep.subr.mxu0 0.0
    %153 = vmatpush1.msra.mxu0 0.0
    %154 = vmatprep.subr.mxu0 0.0
    %155 = vmatpush1.msra.mxu0 0.0
    %156 = vmatprep.subr.mxu0 0.0
    %157 = vmatpush1.msra.mxu0 0.0
    %158 = vmatprep.subr.mxu0 0.0
    %159 = vmatpush1.msra.mxu0 0.0
    %160 = vmatprep.subr.mxu0 0.0
    %161 = vmatpush1.msra.mxu0 0.0
    %162 = vmatprep.subr.mxu0 0.0
    %163 = vmatpush1.msra.mxu0 0.0
    %164 = vmatprep.subr.mxu0 0.0
    %165 = vmatpush1.msra.mxu0 0.0
    %166 = vmatprep.subr.mxu0 0.0
    %167 = vmatpush1.msra.mxu0 0.0
    %168 = vmatprep.subr.mxu0 0.0
    %169 = vmatpush1.msra.mxu0 0.0
    %170 = vmatprep.subr.mxu0 0.0
    %171 = vmatpush1.msra.mxu0 0.0
    %172 = vmatprep.subr.mxu0 0.0
    %173 = vmatpush1.msra.mxu0 0.0
    %174 = vmatprep.subr.mxu0 0.0
    %175 = vmatpush1.msra.mxu0 0.0
    %176 = vmatprep.subr.mxu0 0.0
    %177 = vmatpush1.msra.mxu0 0.0
    %178 = vmatprep.subr.mxu0 0.0
    %179 = vmatpush1.msra.mxu0 0.0
    %180 = vmatprep.subr.mxu0 0.0
    %181 = vmatpush1.msra.mxu0 0.0
    %182 = vmatprep.subr.mxu0 0.0
    %183 = vmatpush1.msra.mxu0 0.0
    %184 = vmatprep.subr.mxu0 0.0
    %185 = vmatpush1.msra.mxu0 0.0
    %186 = vmatprep.subr.mxu0 0.0
    %187 = vmatpush1.msra.mxu0 0.0
    %188 = vmatprep.subr.mxu0 0.0
    %189 = vmatpush1.msra.mxu0 0.0
    %190 = vmatprep.subr.mxu0 0.0
    %191 = vmatpush1.msra.mxu0 0.0
    %192 = vmatprep.subr.mxu0 0.0
    %193 = vmatpush1.msra.mxu0 0.0
    %194 = vmatprep.subr.mxu0 0.0
    %195 = vmatpush1.msra.mxu0 0.0
    %196 = vmatprep.subr.mxu0 0.0
    %197 = vmatpush1.msra.mxu0 0.0
    %198 = vmatprep.subr.mxu0 0.0
    %199 = vmatpush1.msra.mxu0 0.0
    %200 = vmatprep.subr.mxu0 0.0
    %201 = vmatpush1.msra.mxu0 0.0
    %202 = vmatprep.subr.mxu0 0.0
    %203 = vmatpush1.msra.mxu0 0.0
    %204 = vmatprep.mubr.f32.mxu0 0.0
    %205 = vmatmul.mubr.f32.gmra.mrb[0].mxu0 %v138
    %v206 = vpop.f32.mrb[0].mxu0
    %v207 = vadd.f32 0.0, %v206
    %v208 = vpop.f32.mrb[0].mxu0
    %v209 = vadd.f32 0.0, %v208
    %210 = vdwg.mxu0
    %211 = vmatprep.subr.mxu0 0.0
    %212 = vmatpush1.msra.mxu0 %v87
    %213 = vmatprep.subr.mxu0 0.0
    %214 = vmatpush1.msra.mxu0 0.0
    %215 = vmatprep.subr.mxu0 0.0
    %216 = vmatpush1.msra.mxu0 0.0
    %217 = vmatprep.subr.mxu0 0.0
    %218 = vmatpush1.msra.mxu0 0.0
    %219 = vmatprep.subr.mxu0 0.0
    %220 = vmatpush1.msra.mxu0 0.0
    %221 = vmatprep.subr.mxu0 0.0
    %222 = vmatpush1.msra.mxu0 0.0
    %223 = vmatprep.subr.mxu0 0.0
    %224 = vmatpush1.msra.mxu0 0.0
    %225 = vmatprep.subr.mxu0 0.0
    %226 = vmatpush1.msra.mxu0 0.0
    %227 = vmatprep.subr.mxu0 0.0
    %228 = vmatpush1.msra.mxu0 0.0
    %229 = vmatprep.subr.mxu0 0.0
    %230 = vmatpush1.msra.mxu0 0.0
    %231 = vmatprep.subr.mxu0 0.0
    %232 = vmatpush1.msra.mxu0 0.0
    %233 = vmatprep.subr.mxu0 0.0
    %234 = vmatpush1.msra.mxu0 0.0
    %235 = vmatprep.subr.mxu0 0.0
    %236 = vmatpush1.msra.mxu0 0.0
    %237 = vmatprep.subr.mxu0 0.0
    %238 = vmatpush1.msra.mxu0 0.0
    %239 = vmatprep.subr.mxu0 0.0
    %240 = vmatpush1.msra.mxu0 0.0
    %241 = vmatprep.subr.mxu0 0.0
    %242 = vmatpush1.msra.mxu0 0.0
    %243 = vmatprep.subr.mxu0 0.0
    %244 = vmatpush1.msra.mxu0 0.0
    %245 = vmatprep.subr.mxu0 0.0
    %246 = vmatpush1.msra.mxu0 0.0
    %247 = vmatprep.subr.mxu0 0.0
    %248 = vmatpush1.msra.mxu0 0.0
    %249 = vmatprep.subr.mxu0 0.0
    %250 = vmatpush1.msra.mxu0 0.0
    %251 = vmatprep.subr.mxu0 0.0
    %252 = vmatpush1.msra.mxu0 0.0
    %253 = vmatprep.subr.mxu0 0.0
    %254 = vmatpush1.msra.mxu0 0.0
    %255 = vmatprep.subr.mxu0 0.0
    %256 = vmatpush1.msra.mxu0 0.0
    %257 = vmatprep.subr.mxu0 0.0
    %258 = vmatpush1.msra.mxu0 0.0
    %259 = vmatprep.subr.mxu0 0.0
    %260 = vmatpush1.msra.mxu0 0.0
    %261 = vmatprep.subr.mxu0 0.0
    %262 = vmatpush1.msra.mxu0 0.0
    %263 = vmatprep.subr.mxu0 0.0
    %264 = vmatpush1.msra.mxu0 0.0
    %265 = vmatprep.subr.mxu0 0.0
    %266 = vmatpush1.msra.mxu0 0.0
    %267 = vmatprep.subr.mxu0 0.0
    %268 = vmatpush1.msra.mxu0 0.0
    %269 = vmatprep.subr.mxu0 0.0
    %270 = vmatpush1.msra.mxu0 0.0
    %271 = vmatprep.subr.mxu0 0.0
    %272 = vmatpush1.msra.mxu0 0.0
    %273 = vmatprep.subr.mxu0 0.0
    %274 = vmatpush1.msra.mxu0 0.0
    %275 = vmatprep.mubr.f32.mxu0 0.0
    %276 = vmatmul.mubr.f32.gmra.mrb[0].mxu0 %v138
    %v277 = vpop.f32.mrb[0].mxu0
    %v278 = vadd.f32 0.0, %v277
    %v279 = vpop.f32.mrb[0].mxu0
    %280 = vdwg.mxu0
    %281 = vmatprep.subr.mxu0 %v89
    %282 = vmatpush1.msra.mxu0 %v88
    %283 = vmatprep.subr.mxu0 %v91
    %284 = vmatpush1.msra.mxu0 %v90
    %285 = vmatprep.subr.mxu0 %v93
    %286 = vmatpush1.msra.mxu0 %v92
    %287 = vmatprep.subr.mxu0 %v95
    %288 = vmatpush1.msra.mxu0 %v94
    %289 = vmatprep.subr.mxu0 %v97
    %290 = vmatpush1.msra.mxu0 %v96
    %291 = vmatprep.subr.mxu0 %v99
    %292 = vmatpush1.msra.mxu0 %v98
    %293 = vmatprep.subr.mxu0 %v101
    %294 = vmatpush1.msra.mxu0 %v100
    %295 = vmatprep.subr.mxu0 %v103
    %296 = vmatpush1.msra.mxu0 %v102
    %297 = vmatprep.subr.mxu0 %v105
    %298 = vmatpush1.msra.mxu0 %v104
    %299 = vmatprep.subr.mxu0 %v107
    %300 = vmatpush1.msra.mxu0 %v106
    %301 = vmatprep.subr.mxu0 %v109
    %302 = vmatpush1.msra.mxu0 %v108
    %303 = vmatprep.subr.mxu0 %v111
    %304 = vmatpush1.msra.mxu0 %v110
    %305 = vmatprep.subr.mxu0 %v113
    %306 = vmatpush1.msra.mxu0 %v112
    %307 = vmatprep.subr.mxu0 %v115
    %308 = vmatpush1.msra.mxu0 %v114
    %309 = vmatprep.subr.mxu0 %v117
    %310 = vmatpush1.msra.mxu0 %v116
    %311 = vmatprep.subr.mxu0 %v119
    %312 = vmatpush1.msra.mxu0 %v118
    %313 = vmatprep.subr.mxu0 0.0
    %314 = vmatpush1.msra.mxu0 0.0
    %315 = vmatprep.subr.mxu0 0.0
    %316 = vmatpush1.msra.mxu0 0.0
    %317 = vmatprep.subr.mxu0 0.0
    %318 = vmatpush1.msra.mxu0 0.0
    %319 = vmatprep.subr.mxu0 0.0
    %320 = vmatpush1.msra.mxu0 0.0
    %321 = vmatprep.subr.mxu0 0.0
    %322 = vmatpush1.msra.mxu0 0.0
    %323 = vmatprep.subr.mxu0 0.0
    %324 = vmatpush1.msra.mxu0 0.0
    %325 = vmatprep.subr.mxu0 0.0
    %326 = vmatpush1.msra.mxu0 0.0
    %327 = vmatprep.subr.mxu0 0.0
    %328 = vmatpush1.msra.mxu0 0.0
    %329 = vmatprep.subr.mxu0 0.0
    %330 = vmatpush1.msra.mxu0 0.0
    %331 = vmatprep.subr.mxu0 0.0
    %332 = vmatpush1.msra.mxu0 0.0
    %333 = vmatprep.subr.mxu0 0.0
    %334 = vmatpush1.msra.mxu0 0.0
    %335 = vmatprep.subr.mxu0 0.0
    %336 = vmatpush1.msra.mxu0 0.0
    %337 = vmatprep.subr.mxu0 0.0
    %338 = vmatpush1.msra.mxu0 0.0
    %339 = vmatprep.subr.mxu0 0.0
    %340 = vmatpush1.msra.mxu0 0.0
    %341 = vmatprep.subr.mxu0 0.0
    %342 = vmatpush1.msra.mxu0 0.0
    %343 = vmatprep.subr.mxu0 0.0
    %344 = vmatpush1.msra.mxu0 0.0
    %345 = vmatprep.mubr.f32.mxu0 0.0
    %346 = vmatmul.mubr.f32.gmra.mrb[0].mxu0 %v84
    %v347 = vpop.f32.mrb[0].mxu0
    %v348 = vadd.f32 0.0, %v347
    %v349 = vpop.f32.mrb[0].mxu0
    %v350 = vadd.f32 0.0, %v349
    %351 = vdwg.mxu0
    %v352 = vadd.f32 %v207, %v348
    %v353 = vmul.f32 %v352, 0.5
    %v354 = vtanh.pop %v353
    %v355 = vmul.f32 %v354, 0.5
    %v356 = vadd.f32 %v355, 0.5
    %v357 = vadd.f32 %v209, %v350
    %v358 = vmul.f32 %v357, 0.5
    %v359 = vtanh.pop %v358
    %v360 = vmul.f32 %v359, 0.5
    %v361 = vadd.f32 %v360, 0.5
    %v362 = vmul.f32 %v356, %v84
    %363 = vmatprep.subr.mxu0 0.0
    %364 = vmatpush1.msra.mxu0 %v120
    %365 = vmatprep.subr.mxu0 0.0
    %366 = vmatpush1.msra.mxu0 %v121
    %367 = vmatprep.subr.mxu0 0.0
    %368 = vmatpush1.msra.mxu0 %v122
    %369 = vmatprep.subr.mxu0 0.0
    %370 = vmatpush1.msra.mxu0 %v123
    %371 = vmatprep.subr.mxu0 0.0
    %372 = vmatpush1.msra.mxu0 %v124
    %373 = vmatprep.subr.mxu0 0.0
    %374 = vmatpush1.msra.mxu0 %v125
    %375 = vmatprep.subr.mxu0 0.0
    %376 = vmatpush1.msra.mxu0 %v126
    %377 = vmatprep.subr.mxu0 0.0
    %378 = vmatpush1.msra.mxu0 %v127
    %379 = vmatprep.subr.mxu0 0.0
    %380 = vmatpush1.msra.mxu0 %v128
    %381 = vmatprep.subr.mxu0 0.0
    %382 = vmatpush1.msra.mxu0 %v129
    %383 = vmatprep.subr.mxu0 0.0
    %384 = vmatpush1.msra.mxu0 %v130
    %385 = vmatprep.subr.mxu0 0.0
    %386 = vmatpush1.msra.mxu0 %v131
    %387 = vmatprep.subr.mxu0 0.0
    %388 = vmatpush1.msra.mxu0 %v132
    %389 = vmatprep.subr.mxu0 0.0
    %390 = vmatpush1.msra.mxu0 %v133
    %391 = vmatprep.subr.mxu0 0.0
    %392 = vmatpush1.msra.mxu0 %v134
    %393 = vmatprep.subr.mxu0 0.0
    %394 = vmatpush1.msra.mxu0 %v135
    %395 = vmatprep.subr.mxu0 0.0
    %396 = vmatpush1.msra.mxu0 0.0
    %397 = vmatprep.subr.mxu0 0.0
    %398 = vmatpush1.msra.mxu0 0.0
    %399 = vmatprep.subr.mxu0 0.0
    %400 = vmatpush1.msra.mxu0 0.0
    %401 = vmatprep.subr.mxu0 0.0
    %402 = vmatpush1.msra.mxu0 0.0
    %403 = vmatprep.subr.mxu0 0.0
    %404 = vmatpush1.msra.mxu0 0.0
    %405 = vmatprep.subr.mxu0 0.0
    %406 = vmatpush1.msra.mxu0 0.0
    %407 = vmatprep.subr.mxu0 0.0
    %408 = vmatpush1.msra.mxu0 0.0
    %409 = vmatprep.subr.mxu0 0.0
    %410 = vmatpush1.msra.mxu0 0.0
    %411 = vmatprep.subr.mxu0 0.0
    %412 = vmatpush1.msra.mxu0 0.0
    %413 = vmatprep.subr.mxu0 0.0
    %414 = vmatpush1.msra.mxu0 0.0
    %415 = vmatprep.subr.mxu0 0.0
    %416 = vmatpush1.msra.mxu0 0.0
    %417 = vmatprep.subr.mxu0 0.0
    %418 = vmatpush1.msra.mxu0 0.0
    %419 = vmatprep.subr.mxu0 0.0
    %420 = vmatpush1.msra.mxu0 0.0
    %421 = vmatprep.subr.mxu0 0.0
    %422 = vmatpush1.msra.mxu0 0.0
    %423 = vmatprep.subr.mxu0 0.0
    %424 = vmatpush1.msra.mxu0 0.0
    %425 = vmatprep.subr.mxu0 0.0
    %426 = vmatpush1.msra.mxu0 0.0
    %427 = vmatprep.mubr.f32.mxu0 0.0
    %428 = vmatmul.mubr.f32.gmra.mrb[0].mxu0 %v362
    %v429 = vpop.f32.mrb[0].mxu0
    %v430 = vadd.f32 0.0, %v429
    %v431 = vpop.f32.mrb[0].mxu0
    %432 = vdwg.mxu0
    %v433 = vadd.f32 %v278, %v430
    %v434 = vtanh.pop %v433
    %v435 = vsub.f32 %v84, %v434
    %v436 = vmul.f32 %v361, %v435
    %v437 = vadd.f32 %v434, %v436
    %438 = vst [vmem:[#allocation11] sm:$0xff] %v437
    // Predicated region
    $region42: #{tpu_custom_call.1} parent=1 // pred_check
      _
    $region43: #{tpu_custom_call.1} parent=1 // pred_check_branch
      %440 = sbr.rel (0) target = $region45
    $region44: #{tpu_custom_call.1} parent=1 // pred_region
      %s442 = ssub.s32 128, 128
      %443 = vsyncadd [#allocation4], %s442
      %s445 = sshll.u32 [#allocation11], 4
      %s446 = int_to_ptr.vmem [resolvable:$true] %s445
      %448 = dma.vmem_to_hbm [thread:$0]  %s446, 128, %s5, [#allocation4]
    $region45: #{tpu_custom_call.1} parent=1 // pred_fallthru
      _
    // Predicated region
    $region46: #{tpu_custom_call.1} parent=1 // pred_check
      _
    $region47: #{tpu_custom_call.1} parent=1 // pred_check_branch
      %450 = sbr.rel (0) target = $region49
    $region48: #{tpu_custom_call.1} parent=1 // pred_region
      %451 = dma.done [#allocation4], 128
    $region49: #{tpu_custom_call.1} parent=1 // pred_fallthru
      _
    %452 = vsyncpa [#allocation3], 1
    %453 = vsyncpa [#allocation6], 1
    %454 = vsyncpa [#allocation9], 1
    %455 = vsyncpa [#allocation4], 1

</llo_original>
